<compile_context>
chip_gen: v7x
topology: tpu7x:2x2x1
jax: 0.10.0
libtpu: 0.0.40
codegen_flags: <defaults>
</compile_context>

<pallas_src>
import functools

import jax
import jax.numpy as jnp
from jax.experimental import pallas as pl
from jax.experimental.pallas import tpu as pltpu

_LANE = 128
_SUBLANE = 8
_NCORES = 2                                # v7x megacore split; harmless elsewhere
# Double-buffered INPUT footprint budget (both operands, both pipeline buffers).
# Conservative for v7x's 64 MiB/TC; on v6e (128 MiB) this could be raised, but
# ~3 MiB per buffer is already >=85% of the HBM roofline.
_VMEM_INPUT_BUDGET_BYTES = 12 * 1024 * 1024


def _l2_kernel(x_ref, y_ref, out_ref, acc_ref, *, block_rows, acc_rows, width,
               blocks_per_core, full_rows, rem_cols, needs_mask):
    """One grid step: accumulate sum((sigmoid(x) - y)^2) over a (rows,width) tile.

    x_ref, y_ref : (block_rows, width) tiles (native dtype)
    out_ref      : (1, 1) per-core partial sum (written on the last inner step)
    acc_ref      : (acc_rows, width) f32 lane-dense VMEM accumulator
    """
    c = pl.program_id(0)            # core / outer split index
    k = pl.program_id(1)            # inner reduction step

    @pl.when(k == 0)
    def _():
        acc_ref[...] = jnp.zeros_like(acc_ref)

    x = x_ref[...].astype(jnp.float32)
    y = y_ref[...].astype(jnp.float32)

    probs = jax.nn.sigmoid(x)       # single EUP op (no f32 divide)
    d = probs - y
    sq = d * d

    if needs_mask:
        # Logical (unclamped) block index; duplicate / ragged / padded elements
        # all land at a global row >= full_rows and are zeroed here.
        b = c * blocks_per_core + k
        grow = jax.lax.broadcasted_iota(jnp.int32, sq.shape, 0) + b * block_rows
        valid = grow < full_rows
        if rem_cols:
            col = jax.lax.broadcasted_iota(jnp.int32, sq.shape, 1)
            valid = valid | ((grow == full_rows) & (col < rem_cols))
        sq = jnp.where(valid, sq, 0.0)

    groups = block_rows // acc_rows
    # Sublane-grouping reshape is layout-trivial; the sum over groups is plain
    # full-width VPU adds into the lane-dense accumulator.
    acc_ref[...] += jnp.sum(sq.reshape(groups, acc_rows, width), axis=0)

    @pl.when(k == pl.num_programs(1) - 1)
    def _():
        # Single cross-lane/sublane reduce per core, once per kernel.
        out_ref[...] = jnp.sum(acc_ref[...], keepdims=True)


def _pick_width(total):
    for w in (1024, 512, 256, 128):
        if total % w == 0:
            return w
    return None


def _choose_block_rows(rows, width, bytes_x, bytes_y):
    """Largest sublane-aligned row count whose 2x-buffered footprint fits."""
    per_row = 2 * width * (bytes_x + bytes_y)       # 2 pipeline buffers per input
    max_rows = max(_SUBLANE,
                   (_VMEM_INPUT_BUDGET_BYTES // per_row) // _SUBLANE * _SUBLANE)
    if rows < _SUBLANE:
        return rows                                 # full-dim block (exempt)
    return min(max_rows, (rows // _SUBLANE) * _SUBLANE)


@jax.jit
def l2_loss(logits, labels):
    """Matches L2Loss.forward(logits, labels) in PyTorch."""
    total = logits.size
    x = logits.reshape(-1)
    y = labels.reshape(-1)

    width = _pick_width(total)
    if width is None:
        # Rare ragged case: pad the flat inputs to a lane multiple (one extra
        # HBM pass); the flat-index mask in the kernel zeroes the overhang.
        pad = (-total) % _LANE
        x = jnp.pad(x, (0, pad))
        y = jnp.pad(y, (0, pad))
        width = _LANE

    rows = x.shape[0] // width
    x = x.reshape(rows, width)                      # free reshape of contiguous data
    y = y.reshape(rows, width)

    block_rows = _choose_block_rows(rows, width, x.dtype.itemsize, y.dtype.itemsize)
    acc_rows = block_rows if block_rows < _SUBLANE else _SUBLANE
    num_blocks = pl.cdiv(rows, block_rows)
    blocks_per_core = pl.cdiv(num_blocks, _NCORES)

    full_rows, rem_cols = divmod(total, width)
    needs_mask = (rem_cols != 0) or (rows % block_rows != 0) \
        or (num_blocks % _NCORES != 0)

    kernel = functools.partial(
        _l2_kernel,
        block_rows=block_rows,
        acc_rows=acc_rows,
        width=width,
        blocks_per_core=blocks_per_core,
        full_rows=full_rows,
        rem_cols=rem_cols,
        needs_mask=needs_mask,
    )

    def in_map(c, k):
        # Clamp to a valid block for the DMA; over-range blocks are fully
        # masked in-kernel, so no double counting.
        return (jnp.minimum(c * blocks_per_core + k, num_blocks - 1), 0)

    partials = pl.pallas_call(
        kernel,
        out_shape=jax.ShapeDtypeStruct((_NCORES, 1, 1), jnp.float32),
        grid_spec=pltpu.PrefetchScalarGridSpec(
            num_scalar_prefetch=0,
            grid=(_NCORES, blocks_per_core),
            in_specs=[
                pl.BlockSpec((block_rows, width), in_map),
                pl.BlockSpec((block_rows, width), in_map),
            ],
            out_specs=pl.BlockSpec((None, 1, 1), lambda c, k: (c, 0, 0)),
            scratch_shapes=[pltpu.VMEM((acc_rows, width), jnp.float32)],
        ),
        compiler_params=pltpu.CompilerParams(
            dimension_semantics=("parallel", "arbitrary"),
            vmem_limit_bytes=32 * 1024 * 1024,
        ),
    )(x, y)

    return jnp.sum(partials) * (1.0 / float(total))


def l2_loss_ref(logits, labels):
    probs = jax.nn.sigmoid(logits.astype(jnp.float32))
    d = probs.reshape(-1) - labels.reshape(-1).astype(jnp.float32)
    return jnp.mean(d * d)


if __name__ == "__main__":
    key = jax.random.PRNGKey(0)
    k1, k2 = jax.random.split(key)

    # NCHW inputs, like the PyTorch module would receive
    N, C, H, W = 2, 4, 16, 16
    logits = jax.random.normal(k1, (N, C, H, W), jnp.float32)
    labels = jax.random.bernoulli(k2, 0.5, (N, C, H, W)).astype(jnp.float32)

    out = l2_loss(logits, labels)
    out = jax.block_until_ready(out)

    ref = l2_loss_ref(logits, labels)
    assert jnp.allclose(out, ref, rtol=1e-5, atol=1e-6), (out, ref)

    print("KERNEL_OK")
</pallas_src>

<mosaic_0001>
module attributes {stable_mosaic.version = 11 : i64} {
  func.func @_l2_kernel(%arg0: i32, %arg1: i32, %arg2: memref<2x1024xf32, #tpu.memory_space<vmem>>, %arg3: memref<2x1024xf32, #tpu.memory_space<vmem>>, %arg4: memref<1x1x1xf32, #tpu.memory_space<vmem>>, %arg5: memref<2x1024xf32, #tpu.memory_space<vmem>>) attributes {dimension_semantics = [#tpu.dimension_semantics<parallel>, #tpu.dimension_semantics<arbitrary>], iteration_bounds = array<i64: 2, 1>, scalar_prefetch = 0 : i64, scratch_operands = 1 : i64, tpu.core_type = #tpu.core_type<tc>, window_params = [{transform_indices = @transform_0, window_bounds = array<i64: 2, 1024>}, {transform_indices = @transform_1, window_bounds = array<i64: 2, 1024>}, {transform_indices = @transform_2, window_bounds = array<i64: 1, 1, 1>}]} {
    %c0_i32 = arith.constant 0 : i32
    %0 = arith.cmpi eq, %arg1, %c0_i32 : i32
    %1 = arith.extui %0 : i1 to i32
    %c0_i32_0 = arith.constant 0 : i32
    %2 = arith.cmpi ne, %1, %c0_i32_0 : i32
    scf.if %2 {
      %cst_13 = arith.constant 0.000000e+00 : f32
      %30 = vector.broadcast %cst_13 : f32 to vector<2x1024xf32>
      %c0_14 = arith.constant 0 : index
      %c0_15 = arith.constant 0 : index
      %31 = vector.load %arg5[%c0_14, %c0_15] : memref<2x1024xf32, #tpu.memory_space<vmem>>, vector<2x1024xf32>
      tpu.vector_store %arg5[%c0_14, %c0_15], %30 {strides = array<i32>} : memref<2x1024xf32, #tpu.memory_space<vmem>>, vector<2x1024xf32>,
    } else {
    }
    %c0 = arith.constant 0 : index
    %c0_1 = arith.constant 0 : index
    %3 = vector.load %arg2[%c0, %c0_1] : memref<2x1024xf32, #tpu.memory_space<vmem>>, vector<2x1024xf32>
    %c0_2 = arith.constant 0 : index
    %c0_3 = arith.constant 0 : index
    %4 = vector.load %arg3[%c0_2, %c0_3] : memref<2x1024xf32, #tpu.memory_space<vmem>>, vector<2x1024xf32>
    %5 = arith.negf %3 : vector<2x1024xf32>
    %6 = math.exp %5 : vector<2x1024xf32>
    %cst = arith.constant 1.000000e+00 : f32
    %7 = vector.broadcast %cst : f32 to vector<2x1024xf32>
    %8 = arith.addf %7, %6 : vector<2x1024xf32>
    %9 = arith.divf %7, %8 : vector<2x1024xf32>
    %10 = arith.subf %9, %4 : vector<2x1024xf32>
    %11 = arith.mulf %10, %10 : vector<2x1024xf32>
    %c1_i32 = arith.constant 1 : i32
    %12 = arith.muli %arg0, %c1_i32 : i32
    %13 = arith.addi %12, %arg1 : i32
    %14 = tpu.iota {dimensions = array<i32: 0>} : vector<2x1024xi32>
    %c2_i32 = arith.constant 2 : i32
    %15 = arith.muli %13, %c2_i32 : i32
    %16 = vector.broadcast %15 : i32 to vector<2x1024xi32>
    %17 = arith.addi %14, %16 : vector<2x1024xi32>
    %c2_i32_4 = arith.constant 2 : i32
    %18 = vector.broadcast %c2_i32_4 : i32 to vector<2x1024xi32>
    %19 = arith.cmpi slt, %17, %18 : vector<2x1024xi32>
    %cst_5 = arith.constant 0.000000e+00 : f32
    %20 = vector.broadcast %cst_5 : f32 to vector<2x1024xf32>
    %21 = arith.select %19, %11, %20 : vector<2x1024xi1>, vector<2x1024xf32>
    %c0_6 = arith.constant 0 : index
    %c0_7 = arith.constant 0 : index
    %22 = vector.load %arg5[%c0_6, %c0_7] : memref<2x1024xf32, #tpu.memory_space<vmem>>, vector<2x1024xf32>
    %23 = vector.shape_cast %21 : vector<2x1024xf32> to vector<1x2x1024xf32>
    %cst_8 = arith.constant dense<0.000000e+00> : vector<2x1024xf32>
    %24 = vector.multi_reduction <add>, %23, %cst_8 [0] : vector<1x2x1024xf32> to vector<2x1024xf32>
    %25 = arith.addf %22, %24 : vector<2x1024xf32>
    %c0_9 = arith.constant 0 : index
    %c0_10 = arith.constant 0 : index
    %26 = vector.load %arg5[%c0_9, %c0_10] : memref<2x1024xf32, #tpu.memory_space<vmem>>, vector<2x1024xf32>
    tpu.vector_store %arg5[%c0_9, %c0_10], %25 {strides = array<i32>} : memref<2x1024xf32, #tpu.memory_space<vmem>>, vector<2x1024xf32>,
    %c0_i32_11 = arith.constant 0 : i32
    %27 = arith.cmpi eq, %arg1, %c0_i32_11 : i32
    %28 = arith.extui %27 : i1 to i32
    %c0_i32_12 = arith.constant 0 : i32
    %29 = arith.cmpi ne, %28, %c0_i32_12 : i32
    scf.if %29 {
      %c0_13 = arith.constant 0 : index
      %c0_14 = arith.constant 0 : index
      %30 = vector.load %arg5[%c0_13, %c0_14] : memref<2x1024xf32, #tpu.memory_space<vmem>>, vector<2x1024xf32>
      %31 = vector.shape_cast %30 : vector<2x1024xf32> to vector<1x2x1024xf32>
      %cst_15 = arith.constant dense<0.000000e+00> : vector<1xf32>
      %32 = vector.multi_reduction <add>, %31, %cst_15 [1, 2] : vector<1x2x1024xf32> to vector<1xf32>
      %33 = vector.shape_cast %32 : vector<1xf32> to vector<1x1x1xf32>
      %34 = vector.extract %33[0, 0, 0] : f32 from vector<1x1x1xf32>
      %35 = vector.broadcast %34 : f32 to vector<1x1xf32>
      %c0_16 = arith.constant 0 : index
      %c0_17 = arith.constant 0 : index
      %c0_18 = arith.constant 0 : index
      %36 = vector.load %arg4[%c0_16, %c0_17, %c0_18] : memref<1x1x1xf32, #tpu.memory_space<vmem>>, vector<1x1x1xf32>
      %37 = vector.shape_cast %36 : vector<1x1x1xf32> to vector<1x1xf32>
      %38 = vector.shape_cast %35 : vector<1x1xf32> to vector<1x1x1xf32>
      tpu.vector_store %arg4[%c0_16, %c0_17, %c0_18], %38 {strides = array<i32>} : memref<1x1x1xf32, #tpu.memory_space<vmem>>, vector<1x1x1xf32>,
    } else {
    }
    return
  }
  func.func @transform_0(%arg0: i32, %arg1: i32) -> (i32, i32) {
    %c1_i32 = arith.constant 1 : i32
    %0 = arith.muli %arg0, %c1_i32 : i32
    %1 = arith.addi %0, %arg1 : i32
    %c0_i32 = arith.constant 0 : i32
    %2 = arith.minsi %1, %c0_i32 : i32
    %c0_i32_0 = arith.constant 0 : i32
    %c0_i32_1 = arith.constant 0 : i32
    return %2, %c0_i32_0 : i32, i32
  }
  func.func @transform_1(%arg0: i32, %arg1: i32) -> (i32, i32) {
    %c1_i32 = arith.constant 1 : i32
    %0 = arith.muli %arg0, %c1_i32 : i32
    %1 = arith.addi %0, %arg1 : i32
    %c0_i32 = arith.constant 0 : i32
    %2 = arith.minsi %1, %c0_i32 : i32
    %c0_i32_0 = arith.constant 0 : i32
    %c0_i32_1 = arith.constant 0 : i32
    return %2, %c0_i32_0 : i32, i32
  }
  func.func @transform_2(%arg0: i32, %arg1: i32) -> (i32, i32, i32) {
    %c0_i32 = arith.constant 0 : i32
    %c0_i32_0 = arith.constant 0 : i32
    %c0_i32_1 = arith.constant 0 : i32
    return %arg0, %c0_i32, %c0_i32_0 : i32, i32, i32
  }
}

</mosaic_0001>

<llo_original>
// kernel: l2_loss.1
$region0: #{l2_loss.1}
  #allocation0 [shape = 'u32[]', space=smem, size = 0x4, offset = 0x4, fixed_abs, tag = 'smem constant byte address 0x4 - core index']
  #allocation1 [shape = 'u32[144,128]{1,0:T(1,128)}', space=vmem, size = 0x12000, scoped, tag = 'internal scratch']
  #allocation2 [shape = 'f32[2,1024]{1,0:T(2,128)}', space=vmem, size = 0x2000, scoped, tag = 'scratch operand']
  %s0 = inlined_call_operand.vmem [shape: f32[2,1024], index: 0, kind: input, shape index: {}]
  %s1 = inlined_call_operand.vmem [shape: f32[2,1024], index: 1, kind: input, shape index: {}]
  %s2 = inlined_call_operand.vmem [shape: f32[2,1,1], index: 2, kind: output, shape index: {}]
  %s3 = sld [smem:[#allocation0]]
  $region49: #{l2_loss.1} parent=0
    _
  %s5 = ssub.s32 1, %s3
  %s6 = scalar_select 0, %s5, %s3
  loop: start=0, step=1, limit=4
  $region2: #{l2_loss.1} parent=0 // loop_pre_header
    _
  $region3: #{l2_loss.1} parent=0 // loop_header
    %s8 = sphi 0, %s12
    %p9 = scmp.ge.s32.totalorder %s8, 4
    %s15 = sphi 0, %s27
    %s16 = sphi 0, %s23
    %s17 = sphi 0, %s15
    %s18 = sphi 0, %s16
    %s19 = sphi 0, %s17
    %s20 = sphi 0, %s18
    %s36 = sphi 0, %s38
    %s39 = sphi 0, %s36
    %s40 = sphi 0, %s39
    %s56 = sphi 0, %s40
    %s68 = sphi 0, %s70
    %s71 = sphi 0, %s68
    %s72 = sphi 0, %s71
    %s88 = sphi 0, %s72
    %s94 = sphi 0, %s96
    %s97 = sphi 0, %s94
    %s98 = sphi 0, %s97
    %s114 = sphi 0, %s98
  $region4: #{l2_loss.1} parent=0 // loop_header_branch
    %11 = sbr.rel (%p9) target = $region8
  $region5: #{l2_loss.1} parent=0 // loop_body
    %s13 = ssub.s32 %s8, 1
    %s14 = ssub.s32 %s8, 2
    %s21 = sadd.s32 1, %s16
    %p22 = scmp.ge.s32.totalorder %s21, 1
    %s23 = scalar_select %p22, 0, %s21
    %s24 = sadd.s32 1, %s15
    %s25 = scalar_select %p22, %s24, %s15
    %p26 = scmp.ge.s32.totalorder %s25, 2
    %s27 = scalar_select %p26, 0, %s25
    %s28 = sadd.s32 %s15, %s16
    %p29 = scmp.lt.s32.totalorder %s28, 0
    %s30 = scalar_select %p29, %s28, 0
    %s31 = sadd.s32 %s27, %s23
    %p32 = scmp.lt.s32.totalorder %s31, 0
    %s33 = scalar_select %p32, %s31, 0
    %s34 = ssub.s32 %s30, %s33
    %p35 = scmp.eq.s32.totalorder %s34, 0
    %s37 = sadd.s32 %s36, 1
    %s38 = scalar_select %p35, %s36, %s37
    %p41 = pneg %p35
    %p42 = scmp.eq.s32.totalorder %s8, 1
    %p43 = por %p41, %p42
    %p44 = scmp.ne.s32.totalorder %s36, %s39
    %p45 = scmp.eq.s32.totalorder %s8, 0
    %p46 = por %p44, %p45
    %p47 = scmp.ne.s32.totalorder %s36, %s39
    %p48 = scmp.eq.s32.totalorder %s13, 1
    %p49 = por %p47, %p48
    %p50 = scmp.ne.s32.totalorder %s39, %s40
    %p51 = scmp.eq.s32.totalorder %s13, 0
    %p52 = por %p50, %p51
    %p53 = scmp.ne.s32.totalorder %s39, %s40
    %p54 = scmp.eq.s32.totalorder %s14, 1
    %p55 = por %p53, %p54
    %p57 = scmp.ne.s32.totalorder %s40, %s56
    %p58 = scmp.eq.s32.totalorder %s14, 0
    %p59 = por %p57, %p58
    %s60 = sadd.s32 %s15, %s16
    %p61 = scmp.lt.s32.totalorder %s60, 0
    %s62 = scalar_select %p61, %s60, 0
    %s63 = sadd.s32 %s27, %s23
    %p64 = scmp.lt.s32.totalorder %s63, 0
    %s65 = scalar_select %p64, %s63, 0
    %s66 = ssub.s32 %s62, %s65
    %p67 = scmp.eq.s32.totalorder %s66, 0
    %s69 = sadd.s32 %s68, 1
    %s70 = scalar_select %p67, %s68, %s69
    %p73 = pneg %p67
    %p74 = scmp.eq.s32.totalorder %s8, 1
    %p75 = por %p73, %p74
    %p76 = scmp.ne.s32.totalorder %s68, %s71
    %p77 = scmp.eq.s32.totalorder %s8, 0
    %p78 = por %p76, %p77
    %p79 = scmp.ne.s32.totalorder %s68, %s71
    %p80 = scmp.eq.s32.totalorder %s13, 1
    %p81 = por %p79, %p80
    %p82 = scmp.ne.s32.totalorder %s71, %s72
    %p83 = scmp.eq.s32.totalorder %s13, 0
    %p84 = por %p82, %p83
    %p85 = scmp.ne.s32.totalorder %s71, %s72
    %p86 = scmp.eq.s32.totalorder %s14, 1
    %p87 = por %p85, %p86
    %p89 = scmp.ne.s32.totalorder %s72, %s88
    %p90 = scmp.eq.s32.totalorder %s14, 0
    %p91 = por %p89, %p90
    %s92 = ssub.s32 %s15, %s27
    %p93 = scmp.eq.s32.totalorder %s92, 0
    %s95 = sadd.s32 %s94, 1
    %s96 = scalar_select %p93, %s94, %s95
    %p99 = pneg %p93
    %p100 = scmp.eq.s32.totalorder %s8, 1
    %p101 = por %p99, %p100
    %p102 = scmp.ne.s32.totalorder %s94, %s97
    %p103 = scmp.eq.s32.totalorder %s8, 0
    %p104 = por %p102, %p103
    %p105 = scmp.ne.s32.totalorder %s94, %s97
    %p106 = scmp.eq.s32.totalorder %s13, 1
    %p107 = por %p105, %p106
    %p108 = scmp.ne.s32.totalorder %s97, %s98
    %p109 = scmp.eq.s32.totalorder %s13, 0
    %p110 = por %p108, %p109
    %p111 = scmp.ne.s32.totalorder %s97, %s98
    %p112 = scmp.eq.s32.totalorder %s14, 1
    %p113 = por %p111, %p112
    %p115 = scmp.ne.s32.totalorder %s98, %s114
    %p116 = scmp.eq.s32.totalorder %s14, 0
    %p117 = por %p115, %p116
    %p118 = scmp.le.s32.totalorder 1, %s8
    %p119 = scmp.lt.s32.totalorder %s8, 3
    %p120 = pnand %p118, %p119
    %p121 = pneg %p120
    // Predicated region
    $region9: #{l2_loss.1} parent=5 // pred_check
      _
    $region10: #{l2_loss.1} parent=5 // pred_check_branch
      %123 = sbr.rel (%p120) target = $region12
    $region11: #{l2_loss.1} parent=5 // pred_region
      %s124 = ssub.s32 %s8, 1
    $region12: #{l2_loss.1} parent=5 // pred_fallthru
      _
    %p125 = scmp.lt.s32.totalorder %s8, 2
    // Predicated region
    $region13: #{l2_loss.1} parent=5 // pred_check
      %p126 = pneg %p125
    $region14: #{l2_loss.1} parent=5 // pred_check_branch
      %128 = sbr.rel (%p126) target = $region16
    $region15: #{l2_loss.1} parent=5 // pred_region
      // Predicated region
      $region17: #{l2_loss.1} parent=15 // pred_check
        %p129 = pneg %p46
      $region18: #{l2_loss.1} parent=15 // pred_check_branch
        %131 = sbr.rel (%p129) target = $region20
      $region19: #{l2_loss.1} parent=15 // pred_region
        %s132 = sadd.s32 %s15, %s16
        %p133 = scmp.lt.s32.totalorder %s132, 0
        %s134 = scalar_select %p133, %s132, 0
        %p135 = scmp.lt.s32.totalorder %s134, 0
        %s136 = scalar_select %p135, %s134, 0
        %s137 = smul.addr %s136, 8
        %s138 = smul.addr %s137, 2
        %s139 = scalar_lea.vmem %s0, %s138
        %s140 = sadd.s32 %s15, %s16
        %p141 = scmp.lt.s32.totalorder %s140, 0
        %s142 = scalar_select %p141, %s140, 0
      $region20: #{l2_loss.1} parent=15 // pred_fallthru
        _
      // Predicated region
      $region21: #{l2_loss.1} parent=15 // pred_check
        %p143 = pneg %p78
      $region22: #{l2_loss.1} parent=15 // pred_check_branch
        %145 = sbr.rel (%p143) target = $region24
      $region23: #{l2_loss.1} parent=15 // pred_region
        %s146 = sadd.s32 %s15, %s16
        %p147 = scmp.lt.s32.totalorder %s146, 0
        %s148 = scalar_select %p147, %s146, 0
        %p149 = scmp.lt.s32.totalorder %s148, 0
        %s150 = scalar_select %p149, %s148, 0
        %s151 = smul.addr %s150, 8
        %s152 = smul.addr %s151, 2
        %s153 = scalar_lea.vmem %s1, %s152
        %s154 = sadd.s32 %s15, %s16
        %p155 = scmp.lt.s32.totalorder %s154, 0
        %s156 = scalar_select %p155, %s154, 0
      $region24: #{l2_loss.1} parent=15 // pred_fallthru
        _
    $region16: #{l2_loss.1} parent=5 // pred_fallthru
      _
    %p157 = scmp.le.s32.totalorder 1, %s8
    %p158 = scmp.lt.s32.totalorder %s8, 3
    %p159 = pnand %p157, %p158
    %p160 = pneg %p159
    // Predicated region
    $region25: #{l2_loss.1} parent=5 // pred_check
      _
    $region26: #{l2_loss.1} parent=5 // pred_check_branch
      %162 = sbr.rel (%p159) target = $region28
    $region27: #{l2_loss.1} parent=5 // pred_region
      %s163 = ssub.s32 %s8, 1
      %s164 = sadd.s32 %s17, %s18
      %p165 = scmp.lt.s32.totalorder %s164, 0
      %s166 = scalar_select %p165, %s164, 0
      %p167 = scmp.lt.s32.totalorder %s166, 0
      %s168 = scalar_select %p167, %s166, 0
      %s169 = smul.addr %s168, 8
      %s170 = smul.addr %s169, 2
      %s171 = scalar_lea.vmem %s0, %s170
      %p172 = pneg %p52
      %p173 = pneg %p49
      %s174 = sadd.s32 %s17, %s18
      %p175 = scmp.lt.s32.totalorder %s174, 0
      %s176 = scalar_select %p175, %s174, 0
      %p177 = scmp.lt.s32.totalorder %s176, 0
      %s178 = scalar_select %p177, %s176, 0
      %s179 = smul.addr %s178, 8
      %s180 = smul.addr %s179, 2
      %s181 = scalar_lea.vmem %s1, %s180
      %p182 = pneg %p84
      %p183 = pneg %p81
      %p184 = pneg %p110
      %p185 = pneg %p107
      %p186 = scmp.lt.s32.totalorder %s17, 1
      %s187 = scalar_select %p186, %s17, 1
      %s188 = scalar_lea.vmem %s2, %s187
      %s189 = sadd.s32 %s17, %s18
      %p190 = scmp.lt.s32.totalorder %s189, 0
      %s191 = scalar_select %p190, %s189, 0
      %p192 = scmp.lt.s32.totalorder %s191, 0
      %s193 = scalar_select %p192, %s191, 0
      %s194 = smul.addr %s193, 8
      %s195 = smul.addr %s194, 2
      %s196 = scalar_lea.vmem %s0, %s195
      %s197 = sadd.s32 %s17, %s18
      %p198 = scmp.lt.s32.totalorder %s197, 0
      %s199 = scalar_select %p198, %s197, 0
      %s200 = sadd.s32 %s17, %s18
      %p201 = scmp.lt.s32.totalorder %s200, 0
      %s202 = scalar_select %p201, %s200, 0
      %p203 = scmp.lt.s32.totalorder %s202, 0
      %s204 = scalar_select %p203, %s202, 0
      %s205 = smul.addr %s204, 8
      %s206 = smul.addr %s205, 2
      %s207 = scalar_lea.vmem %s1, %s206
      %s208 = sadd.s32 %s17, %s18
      %p209 = scmp.lt.s32.totalorder %s208, 0
      %s210 = scalar_select %p209, %s208, 0
      %p211 = scmp.lt.s32.totalorder %s17, 1
      %s212 = scalar_select %p211, %s17, 1
      %s213 = scalar_lea.vmem %s2, %s212
      %p214 = scmp.eq.s32.totalorder %s18, 0
      // Predicated region
      $region29: #{l2_loss.1} parent=27 // pred_check
        %p215 = pneg %p214
      $region30: #{l2_loss.1} parent=27 // pred_check_branch
        %217 = sbr.rel (%p215) target = $region32
      $region31: #{l2_loss.1} parent=27 // pred_region
        %218 = vst [vmem:[#allocation2] sm:$0xff] 0.0
        %219 = vst [vmem:[#allocation2 + $0x8] sm:$0xff] 0.0
      $region32: #{l2_loss.1} parent=27 // pred_fallthru
        _
      %v220 = vld [vmem:[%s196] sm:$0xff]
      %v221 = vld [vmem:[%s196 + $0x8] sm:$0xff]
      %v222 = vld [vmem:[%s207] sm:$0xff]
      %v223 = vld [vmem:[%s207 + $0x8] sm:$0xff]
      %v224 = vxor.u32 %v220, 2147483648
      %v225 = vxor.u32 %v221, 2147483648
      %v226 = vmul.f32 %v224, 1.442695
      %v227 = vpow.pop %v226
      %v228 = vmul.f32 %v225, 1.442695
      %v229 = vpow.pop %v228
      %v230 = vadd.f32 %v227, 1.0
      %v231 = vadd.f32 %v229, 1.0
      %v232 = vrcp.pop %v230
      %v233 = vmul.f32 1.0, %v232
      %v234 = vrcp.pop %v231
      %v235 = vmul.f32 1.0, %v234
      %v236 = vsub.f32 %v233, %v222
      %v237 = vsub.f32 %v235, %v223
      %v238 = vmul.f32 %v236, %v236
      %v239 = vmul.f32 %v237, %v237
      %s240 = sadd.s32 %s17, %s18
      %v241 = vlaneseq
      %v242 = vshrl.u32 %v241, 7
      %s243 = smul.u32 %s240, 2
      %v244 = vstv %s243
      %v245 = vadd.s32 %v242, %v244
      %vm246 = vcmp.lt.s32.totalorder %v245, 2
      %v249 = vcombine.high %v238, %v238
      %v251 = vunpack.c.l.s4 1983009808
      %v252 = vunpack.c.0.s8 %v251
      %v253 = vlaneseq
      %v254 = vshrl.u32 %v253, 7
      %v255 = vsub.s32 %v252, %v254
      %v256 = vrot.slane %v238, %v255
      %v258 = vunpack.c.l.s4 1983009808
      %v259 = vunpack.c.0.s8 %v258
      %v260 = vlaneseq
      %v261 = vshrl.u32 %v260, 7
      %v262 = vsub.s32 %v259, %v261
      %v263 = vrot.slane %v249, %v262
      %v264 = vcombine.high %v256, %v256
      %v265 = vcombine.high %v263, %v263
      %v266 = vcombine.high %v239, %v239
      %v268 = vunpack.c.l.s4 1983009808
      %v269 = vunpack.c.0.s8 %v268
      %v270 = vlaneseq
      %v271 = vshrl.u32 %v270, 7
      %v272 = vsub.s32 %v269, %v271
      %v273 = vrot.slane %v239, %v272
      %v275 = vunpack.c.l.s4 1983009808
      %v276 = vunpack.c.0.s8 %v275
      %v277 = vlaneseq
      %v278 = vshrl.u32 %v277, 7
      %v279 = vsub.s32 %v276, %v278
      %v280 = vrot.slane %v266, %v279
      %v281 = vcombine.high %v273, %v273
      %v282 = vcombine.high %v280, %v280
      %v291 = vsel %vm246, %v256, 0.0
      %v292 = vsel %vm246, %v264, 0.0
      %v293 = vsel %vm246, %v263, 0.0
      %v294 = vsel %vm246, %v265, 0.0
      %v295 = vsel %vm246, %v273, 0.0
      %v296 = vsel %vm246, %v281, 0.0
      %v297 = vsel %vm246, %v280, 0.0
      %v298 = vsel %vm246, %v282, 0.0
      %v299 = vld [vmem:[#allocation2] sm:$0xff]
      %v300 = vld [vmem:[#allocation2 + $0x8] sm:$0xff]
      %v301 = vadd.f32 %v291, 0.0
      %v302 = vadd.f32 %v292, 0.0
      %v303 = vadd.f32 %v293, 0.0
      %v304 = vadd.f32 %v294, 0.0
      %v305 = vadd.f32 %v295, 0.0
      %v306 = vadd.f32 %v296, 0.0
      %v307 = vadd.f32 %v297, 0.0
      %v308 = vadd.f32 %v298, 0.0
      %v317 = vcombine.low %v301, %v302
      %v318 = vcombine.low %v303, %v304
      %v320 = vunpack.c.l.s4 1983009808
      %v321 = vunpack.c.0.s8 %v320
      %v322 = vlaneseq
      %v323 = vshrl.u32 %v322, 7
      %v324 = vsub.s32 %v321, %v323
      %v325 = vrot.slane %v317, %v324
      %v327 = vunpack.c.l.s4 1983009808
      %v328 = vunpack.c.0.s8 %v327
      %v329 = vlaneseq
      %v330 = vshrl.u32 %v329, 7
      %v331 = vsub.s32 %v328, %v330
      %v332 = vrot.slane %v318, %v331
      %v333 = vcombine.low %v325, %v332
      %v334 = vcombine.low %v305, %v306
      %v335 = vcombine.low %v307, %v308
      %v337 = vunpack.c.l.s4 1983009808
      %v338 = vunpack.c.0.s8 %v337
      %v339 = vlaneseq
      %v340 = vshrl.u32 %v339, 7
      %v341 = vsub.s32 %v338, %v340
      %v342 = vrot.slane %v334, %v341
      %v344 = vunpack.c.l.s4 1983009808
      %v345 = vunpack.c.0.s8 %v344
      %v346 = vlaneseq
      %v347 = vshrl.u32 %v346, 7
      %v348 = vsub.s32 %v345, %v347
      %v349 = vrot.slane %v335, %v348
      %v350 = vcombine.low %v342, %v349
      %v353 = vadd.f32 %v299, %v333
      %v354 = vadd.f32 %v300, %v350
      %355 = vst [vmem:[#allocation2] sm:$0xff] %v353
      %356 = vst [vmem:[#allocation2 + $0x8] sm:$0xff] %v354
      // Predicated region
      $region33: #{l2_loss.1} parent=27 // pred_check
        %p357 = pneg %p214
      $region34: #{l2_loss.1} parent=27 // pred_check_branch
        %359 = sbr.rel (%p357) target = $region36
      $region35: #{l2_loss.1} parent=27 // pred_region
        %v360 = vld [vmem:[#allocation2] sm:$0xff]
        %v361 = vld [vmem:[#allocation2 + $0x8] sm:$0xff]
        %v364 = vcombine.high %v360, %v360
        %v366 = vunpack.c.l.s4 1983009808
        %v367 = vunpack.c.0.s8 %v366
        %v368 = vlaneseq
        %v369 = vshrl.u32 %v368, 7
        %v370 = vsub.s32 %v367, %v369
        %v371 = vrot.slane %v360, %v370
        %v373 = vunpack.c.l.s4 1983009808
        %v374 = vunpack.c.0.s8 %v373
        %v375 = vlaneseq
        %v376 = vshrl.u32 %v375, 7
        %v377 = vsub.s32 %v374, %v376
        %v378 = vrot.slane %v364, %v377
        %v379 = vcombine.high %v371, %v371
        %v380 = vcombine.high %v378, %v378
        %v381 = vcombine.high %v361, %v361
        %v383 = vunpack.c.l.s4 1983009808
        %v384 = vunpack.c.0.s8 %v383
        %v385 = vlaneseq
        %v386 = vshrl.u32 %v385, 7
        %v387 = vsub.s32 %v384, %v386
        %v388 = vrot.slane %v361, %v387
        %v390 = vunpack.c.l.s4 1983009808
        %v391 = vunpack.c.0.s8 %v390
        %v392 = vlaneseq
        %v393 = vshrl.u32 %v392, 7
        %v394 = vsub.s32 %v391, %v393
        %v395 = vrot.slane %v381, %v394
        %v396 = vcombine.high %v388, %v388
        %v397 = vcombine.high %v395, %v395
        %vm406 = vcmask 1041408
        %v407 = vsel %vm406, %v371, 0.0
        %v408 = vsel %vm406, %v379, 0.0
        %v409 = vadd.f32 %v407, %v408
        %v410 = vsel %vm406, %v378, 0.0
        %v411 = vadd.f32 %v409, %v410
        %v412 = vsel %vm406, %v380, 0.0
        %v413 = vadd.f32 %v411, %v412
        %v414 = vsel %vm406, %v388, 0.0
        %v415 = vadd.f32 %v413, %v414
        %v416 = vsel %vm406, %v396, 0.0
        %v417 = vadd.f32 %v415, %v416
        %v418 = vsel %vm406, %v395, 0.0
        %v419 = vadd.f32 %v417, %v418
        %v420 = vsel %vm406, %v397, 0.0
        %v421 = vadd.f32 %v419, %v420
        %422 = vadd.xlane.f32.xlu0 %v421
        %v423 = vpop.xlane.xlu0 %422
        %v424 = vrot.slane %v423, 4
        %v425 = vadd.f32 %v423, %v424
        %v426 = vrot.slane %v425, 2
        %v427 = vadd.f32 %v425, %v426
        %v428 = vrot.slane %v427, 1
        %v429 = vadd.f32 %v427, %v428
        %s430 = vtos %v429
        %v431 = vstv %s430
        %vm432 = vcmask 0
        %433 = vst.msk [vmem:[%s213] sm:$0x1] %vm432, %v431
      $region36: #{l2_loss.1} parent=27 // pred_fallthru
        _
      %p434 = scmp.lt.s32.totalorder %s17, 1
      %s435 = scalar_select %p434, %s17, 1
      %s436 = scalar_lea.vmem %s2, %s435
      // Predicated region
      $region37: #{l2_loss.1} parent=27 // pred_check
        %p437 = pneg %p107
      $region38: #{l2_loss.1} parent=27 // pred_check_branch
        %439 = sbr.rel (%p437) target = $region40
      $region39: #{l2_loss.1} parent=27 // pred_region
        _
      $region40: #{l2_loss.1} parent=27 // pred_fallthru
        _
    $region28: #{l2_loss.1} parent=5 // pred_fallthru
      _
    %p440 = scmp.le.s32.totalorder 2, %s8
    // Predicated region
    $region41: #{l2_loss.1} parent=5 // pred_check
      %p441 = pneg %p440
    $region42: #{l2_loss.1} parent=5 // pred_check_branch
      %443 = sbr.rel (%p441) target = $region44
    $region43: #{l2_loss.1} parent=5 // pred_region
      %s444 = ssub.s32 %s8, 2
      // Predicated region
      $region45: #{l2_loss.1} parent=43 // pred_check
        %p445 = pneg %p113
      $region46: #{l2_loss.1} parent=43 // pred_check_branch
        %447 = sbr.rel (%p445) target = $region48
      $region47: #{l2_loss.1} parent=43 // pred_region
        %p448 = scmp.lt.s32.totalorder %s19, 1
        %s449 = scalar_select %p448, %s19, 1
        %s450 = scalar_lea.vmem %s2, %s449
      $region48: #{l2_loss.1} parent=43 // pred_fallthru
        _
    $region44: #{l2_loss.1} parent=5 // pred_fallthru
      _
  $region6: #{l2_loss.1} parent=0 // loop_footer
    %s12 = sadd.s32 1, %s8
  $region7: #{l2_loss.1} parent=0 // loop_footer_branch
    %7 = sbr.rel target = $region3
  $region8: #{l2_loss.1} parent=0 // loop_exit
    _

</llo_original>
